<compile_context>
chip_gen: v7x
topology: tpu7x:2x2x1
jax: 0.10.0
libtpu: 0.0.40
codegen_flags: <defaults>
</compile_context>

<pallas_src>
import functools

import jax
import jax.numpy as jnp
from jax.experimental import pallas as pl
from jax.experimental.pallas import tpu as pltpu


_MIB = 1024 * 1024


def _round_up(x, m):
    return (x + m - 1) // m * m


def _cdiv(a, b):
    return (a + b - 1) // b


def _vmem_budget_bytes():
    """Usable VMEM budget (physical capacity minus ~25% headroom), v7x-safe fallback."""
    cap = 64 * _MIB  # conservative default: v7x per-TensorCore VMEM
    try:
        info = pltpu.get_tpu_info()
        cap = int(getattr(info, "vmem_capacity_bytes", cap))
    except Exception:
        pass
    return max((cap * 3) // 4, 32 * _MIB)


# ----------------------------------------------------------------------------------
# Kernels
# ----------------------------------------------------------------------------------
def _mlp_kernel_resident(x_ref, w_fc_ref, b_fc_ref, w_proj_ref, b_proj_ref, o_ref, *,
                         ti, compute_dtype):
    """Weight-resident variant: full weights live in VMEM; loop over ti chunks of I."""
    x = x_ref[...].astype(compute_dtype)           # cast on the VPU, DMA'd once as-is
    i_pad = w_fc_ref.shape[1]
    n_chunks = i_pad // ti

    acc = jnp.zeros((x_ref.shape[0], o_ref.shape[1]), jnp.float32)
    # Statically unrolled chunk loop: static ref slices are free views, and the LLO
    # scheduler can overlap the two MXU dots of adjacent chunks.
    for k in range(n_chunks):
        lo, hi = k * ti, (k + 1) * ti
        h = jnp.dot(x, w_fc_ref[:, lo:hi], preferred_element_type=jnp.float32)
        h = h + b_fc_ref[:, lo:hi].astype(jnp.float32)
        h = jax.nn.gelu(h, approximate=True)        # gelu_new (tanh approximation)
        acc = acc + jnp.dot(h.astype(compute_dtype), w_proj_ref[lo:hi, :],
                            preferred_element_type=jnp.float32)

    o_ref[...] = (acc + b_proj_ref[...].astype(jnp.float32)).astype(o_ref.dtype)


def _mlp_kernel_streaming(x_ref, w_fc_ref, b_fc_ref, w_proj_ref, b_proj_ref, o_ref,
                          acc_ref, *, compute_dtype):
    """K-streaming variant: I is a grid axis; partials accumulate in a f32 VMEM scratch."""
    k = pl.program_id(1)

    @pl.when(k == 0)
    def _():
        acc_ref[...] = jnp.zeros_like(acc_ref)

    x = x_ref[...].astype(compute_dtype)            # x block is K-invariant: DMA'd once/M tile
    h = jnp.dot(x, w_fc_ref[...], preferred_element_type=jnp.float32)
    h = h + b_fc_ref[...].astype(jnp.float32)
    h = jax.nn.gelu(h, approximate=True)            # gelu_new (tanh approximation)
    acc_ref[...] += jnp.dot(h.astype(compute_dtype), w_proj_ref[...],
                            preferred_element_type=jnp.float32)

    @pl.when(k == pl.num_programs(1) - 1)
    def _():
        o_ref[...] = (acc_ref[...] + b_proj_ref[...].astype(jnp.float32)).astype(o_ref.dtype)


# ----------------------------------------------------------------------------------
# One-time weight preparation (hoisted out of the per-call path)
# ----------------------------------------------------------------------------------
def prepare_codesage_mlp_params(w_fc, b_fc, w_proj, b_proj, *, ti=1024,
                                compute_dtype=jnp.bfloat16):
    """Pad the intermediate dim, cast weights to the MXU dtype, reshape biases.

    Call once at model-load time; the returned dict is passed to codesage_mlp_prepared.
    """
    H, I = w_fc.shape
    assert w_proj.shape == (I, H) and b_fc.shape == (I,) and b_proj.shape == (H,)

    ti_eff = min(ti, _round_up(I, 128))             # lane-aligned chunk of I
    i_pad = _round_up(I, ti_eff)
    if i_pad != I:
        # Zero padding is load-bearing: gelu(0 + 0) == 0 and the zero rows of w_proj
        # kill any contribution from the padded intermediate columns.
        w_fc = jnp.pad(w_fc, ((0, 0), (0, i_pad - I)))
        b_fc = jnp.pad(b_fc, ((0, i_pad - I),))
        w_proj = jnp.pad(w_proj, ((0, i_pad - I), (0, 0)))

    return dict(
        w_fc=w_fc.astype(compute_dtype),            # (H, I_pad)
        b_fc=b_fc.reshape(1, i_pad).astype(jnp.float32),
        w_proj=w_proj.astype(compute_dtype),        # (I_pad, H)
        b_proj=b_proj.reshape(1, H).astype(jnp.float32),
        ti=int(ti_eff),
        compute_dtype=compute_dtype,
    )


# ----------------------------------------------------------------------------------
# Forward
# ----------------------------------------------------------------------------------
def codesage_mlp_prepared(hidden_states, params, *, tm=512, force_streaming=False):
    """Fused MLP: gelu_new(x @ w_fc + b_fc) @ w_proj + b_proj (dropout = identity)."""
    B, S, H = hidden_states.shape
    w_fc, b_fc = params["w_fc"], params["b_fc"]
    w_proj, b_proj = params["w_proj"], params["b_proj"]
    ti = int(params["ti"])
    compute_dtype = params["compute_dtype"]
    assert w_fc.shape[0] == H and w_proj.shape[1] == H
    i_pad = w_fc.shape[1]

    out_dtype = hidden_states.dtype
    M = B * S
    csize = jnp.dtype(compute_dtype).itemsize
    xsize = jnp.dtype(hidden_states.dtype).itemsize
    osize = jnp.dtype(out_dtype).itemsize

    budget = _vmem_budget_bytes()
    headroom = 4 * _MIB

    # ---- row tiling: big tiles for weight arithmetic intensity, but prefer >= 2 tiles
    #      so the "parallel" M axis shards across both megacore TensorCores.
    tm_eff = min(tm, _round_up(M, 8))
    if M > 256 and _cdiv(M, tm_eff) < 2:
        tm_eff = _round_up(_cdiv(M, 2), 8)

    def resident_need(tm_):
        return (2 * H * i_pad * csize              # w_fc + w_proj fully VMEM-resident
                + (i_pad + H) * 4                  # f32 biases
                + 2 * tm_ * H * xsize              # x tiles (double-buffered)
                + 2 * tm_ * H * osize              # out tiles (double-buffered)
                + tm_ * H * (csize + 4)            # in-kernel bf16 x copy + f32 accumulator
                + 2 * tm_ * ti * 4)                # intermediate h workspace

    def streaming_need(tm_, ti_):
        return (2 * tm_ * H * xsize                # x tiles
                + 2 * H * ti_ * csize              # w_fc K-slices
                + 2 * ti_ * 4                      # b_fc K-slices
                + 2 * ti_ * H * csize              # w_proj K-slices
                + 2 * H * 4                        # b_proj
                + 2 * tm_ * H * osize              # out tiles
                + tm_ * H * 4                      # f32 accumulator scratch
                + tm_ * H * csize                  # in-kernel bf16 x copy
                + 2 * tm_ * ti_ * 4)               # intermediate h workspace

    use_resident = (not force_streaming) and (resident_need(tm_eff) + headroom <= budget)

    ti_eff = ti
    if not use_resident:
        # Clamp tile sizes to the real buffer sum: shrink ti first, then tm.
        while (streaming_need(tm_eff, ti_eff) + headroom > budget
               and ti_eff > 256 and ti_eff % 256 == 0):
            ti_eff //= 2                           # halving keeps I_pad % ti_eff == 0
        while streaming_need(tm_eff, ti_eff) + headroom > budget and tm_eff > 128:
            tm_eff = max(128, _round_up(tm_eff // 2, 8))

    M_pad = _round_up(M, tm_eff)
    x2d = hidden_states.reshape(M, H)
    if M_pad != M:
        x2d = jnp.pad(x2d, ((0, M_pad - M), (0, 0)))
    # NOTE: x is NOT pre-cast to bf16 in the wrapper — it is DMA'd once per M tile in its
    # native dtype and converted on the VPU inside the kernel (halves x HBM traffic).

    if use_resident:
        need = resident_need(tm_eff)
        vmem_limit = int(min(max(need + 8 * _MIB, 32 * _MIB), budget))
        kernel = functools.partial(_mlp_kernel_resident, ti=ti, compute_dtype=compute_dtype)
        out2d = pl.pallas_call(
            kernel,
            out_shape=jax.ShapeDtypeStruct((M_pad, H), out_dtype),
            grid_spec=pltpu.PrefetchScalarGridSpec(
                num_scalar_prefetch=0,
                grid=(M_pad // tm_eff,),
                in_specs=[
                    pl.BlockSpec((tm_eff, H), lambda i: (i, 0)),        # x row tile
                    pl.BlockSpec(memory_space=pltpu.MemorySpace.VMEM),  # w_fc (resident)
                    pl.BlockSpec(memory_space=pltpu.MemorySpace.VMEM),  # b_fc (resident)
                    pl.BlockSpec(memory_space=pltpu.MemorySpace.VMEM),  # w_proj (resident)
                    pl.BlockSpec(memory_space=pltpu.MemorySpace.VMEM),  # b_proj (resident)
                ],
                out_specs=pl.BlockSpec((tm_eff, H), lambda i: (i, 0)),
            ),
            compiler_params=pltpu.CompilerParams(
                dimension_semantics=("parallel",),
                vmem_limit_bytes=vmem_limit,
            ),
        )(x2d, w_fc, b_fc, w_proj, b_proj)
    else:
        need = streaming_need(tm_eff, ti_eff)
        vmem_limit = int(min(max(need + 8 * _MIB, 32 * _MIB), budget))
        kernel = functools.partial(_mlp_kernel_streaming, compute_dtype=compute_dtype)
        out2d = pl.pallas_call(
            kernel,
            out_shape=jax.ShapeDtypeStruct((M_pad, H), out_dtype),
            grid_spec=pltpu.PrefetchScalarGridSpec(
                num_scalar_prefetch=0,
                grid=(M_pad // tm_eff, i_pad // ti_eff),
                in_specs=[
                    pl.BlockSpec((tm_eff, H), lambda i, k: (i, 0)),     # x rows (K-invariant)
                    pl.BlockSpec((H, ti_eff), lambda i, k: (0, k)),     # w_fc K-slice
                    pl.BlockSpec((1, ti_eff), lambda i, k: (0, k)),     # b_fc K-slice
                    pl.BlockSpec((ti_eff, H), lambda i, k: (k, 0)),     # w_proj K-slice
                    pl.BlockSpec((1, H), lambda i, k: (0, 0)),          # b_proj (finalize)
                ],
                out_specs=pl.BlockSpec((tm_eff, H), lambda i, k: (i, 0)),
                scratch_shapes=[pltpu.VMEM((tm_eff, H), jnp.float32)],
            ),
            compiler_params=pltpu.CompilerParams(
                dimension_semantics=("parallel", "arbitrary"),
                vmem_limit_bytes=vmem_limit,
            ),
        )(x2d, w_fc, b_fc, w_proj, b_proj)

    return out2d[:M].reshape(B, S, H)


def codesage_mlp(hidden_states, w_fc, b_fc, w_proj, b_proj, *, tm=512, ti=1024,
                 compute_dtype=jnp.bfloat16, force_streaming=False):
    """Convenience wrapper (prepares weights per call; prefer the prepared API)."""
    params = prepare_codesage_mlp_params(w_fc, b_fc, w_proj, b_proj, ti=ti,
                                         compute_dtype=compute_dtype)
    return codesage_mlp_prepared(hidden_states, params, tm=tm,
                                 force_streaming=force_streaming)


def _reference_mlp(hidden_states, w_fc, b_fc, w_proj, b_proj):
    h = hidden_states @ w_fc + b_fc
    h = jax.nn.gelu(h, approximate=True)
    return h @ w_proj + b_proj


if __name__ == "__main__":
    # Small shapes consistent with the module: batch=2, seq=8, hidden=32, intermediate=4*hidden
    B, S, H = 2, 8, 32
    INTERMEDIATE = 4 * H  # 128

    key = jax.random.PRNGKey(0)
    k_x, k_w1, k_b1, k_w2, k_b2 = jax.random.split(key, 5)

    x = jax.random.normal(k_x, (B, S, H), dtype=jnp.float32)
    # GPT-2 Conv1D init: weight ~ N(0, 0.02); small random bias to exercise the adds.
    w_fc = 0.02 * jax.random.normal(k_w1, (H, INTERMEDIATE), dtype=jnp.float32)
    b_fc = 0.02 * jax.random.normal(k_b1, (INTERMEDIATE,), dtype=jnp.float32)
    w_proj = 0.02 * jax.random.normal(k_w2, (INTERMEDIATE, H), dtype=jnp.float32)
    b_proj = 0.02 * jax.random.normal(k_b2, (H,), dtype=jnp.float32)

    ref = _reference_mlp(x, w_fc, b_fc, w_proj, b_proj)

    # One-time weight preparation (pad + bf16 cast), hoisted out of the forward path.
    params = prepare_codesage_mlp_params(w_fc, b_fc, w_proj, b_proj)

    # Path 1: weight-resident variant (auto-selected: these weights trivially fit VMEM).
    out = jax.block_until_ready(codesage_mlp_prepared(x, params))
    assert out.shape == (B, S, H)
    # bf16 MXU inputs with f32 accumulation: loosened tolerance vs the f32 reference.
    assert jnp.allclose(out, ref, atol=2e-2, rtol=2e-2), "resident path mismatch vs reference"

    # Path 2: K-streaming variant (forced), the configuration used on v7x / huge weights.
    out_s = jax.block_until_ready(codesage_mlp_prepared(x, params, force_streaming=True))
    assert jnp.allclose(out_s, ref, atol=2e-2, rtol=2e-2), "streaming path mismatch vs reference"

    print("KERNEL_OK")
</pallas_src>

<mosaic_0001>
module attributes {stable_mosaic.version = 11 : i64} {
  func.func @_mlp_kernel_resident(%arg0: i32, %arg1: memref<16x32xf32, #tpu.memory_space<vmem>>, %arg2: memref<32x128xbf16, #tpu.memory_space<vmem>>, %arg3: memref<1x128xf32, #tpu.memory_space<vmem>>, %arg4: memref<128x32xbf16, #tpu.memory_space<vmem>>, %arg5: memref<1x32xf32, #tpu.memory_space<vmem>>, %arg6: memref<16x32xf32, #tpu.memory_space<vmem>>) attributes {dimension_semantics = [#tpu.dimension_semantics<parallel>], iteration_bounds = array<i64: 1>, scalar_prefetch = 0 : i64, scratch_operands = 0 : i64, tpu.core_type = #tpu.core_type<tc>, window_params = [{transform_indices = @transform_0, window_bounds = array<i64: 16, 32>}, {pipeline_mode = #tpu.pipeline_mode<synchronous>, transform_indices = @transform_1, window_bounds = array<i64: 32, 128>}, {pipeline_mode = #tpu.pipeline_mode<synchronous>, transform_indices = @transform_2, window_bounds = array<i64: 1, 128>}, {pipeline_mode = #tpu.pipeline_mode<synchronous>, transform_indices = @transform_3, window_bounds = array<i64: 128, 32>}, {pipeline_mode = #tpu.pipeline_mode<synchronous>, transform_indices = @transform_4, window_bounds = array<i64: 1, 32>}, {transform_indices = @transform_5, window_bounds = array<i64: 16, 32>}]} {
    %c0 = arith.constant 0 : index
    %c0_0 = arith.constant 0 : index
    %0 = vector.load %arg1[%c0, %c0_0] : memref<16x32xf32, #tpu.memory_space<vmem>>, vector<16x32xf32>
    %1 = arith.truncf %0 : vector<16x32xf32> to vector<16x32xbf16>
    %cst = arith.constant 0.000000e+00 : f32
    %2 = vector.broadcast %cst : f32 to vector<16x32xf32>
    %c0_1 = arith.constant 0 : index
    %c0_2 = arith.constant 0 : index
    %3 = vector.load %arg2[%c0_1, %c0_2] : memref<32x128xbf16, #tpu.memory_space<vmem>>, vector<32x128xbf16>
    %cst_3 = arith.constant dense<0.000000e+00> : vector<16x128xf32>
    %4 = tpu.matmul %1, %3, %cst_3 {dimension_numbers = #tpu.dot_dimension_numbers<[1], [0], [0], [1], [0, 0, 1, 1], [], []>} : vector<16x32xbf16>, vector<32x128xbf16>, vector<16x128xf32> -> vector<16x128xf32>
    %c0_4 = arith.constant 0 : index
    %c0_5 = arith.constant 0 : index
    %5 = vector.load %arg3[%c0_4, %c0_5] : memref<1x128xf32, #tpu.memory_space<vmem>>, vector<1x128xf32>
    %6 = vector.broadcast %5 : vector<1x128xf32> to vector<16x128xf32>
    %7 = arith.addf %4, %6 : vector<16x128xf32>
    %8 = arith.mulf %7, %7 : vector<16x128xf32>
    %9 = arith.mulf %7, %8 : vector<16x128xf32>
    %cst_6 = arith.constant 4.471500e-02 : f32
    %10 = vector.broadcast %cst_6 : f32 to vector<16x128xf32>
    %11 = arith.mulf %10, %9 : vector<16x128xf32>
    %12 = arith.addf %7, %11 : vector<16x128xf32>
    %cst_7 = arith.constant 0.797884583 : f32
    %13 = vector.broadcast %cst_7 : f32 to vector<16x128xf32>
    %14 = arith.mulf %13, %12 : vector<16x128xf32>
    %15 = math.tanh %14 : vector<16x128xf32>
    %cst_8 = arith.constant 1.000000e+00 : f32
    %16 = vector.broadcast %cst_8 : f32 to vector<16x128xf32>
    %17 = arith.addf %16, %15 : vector<16x128xf32>
    %cst_9 = arith.constant 5.000000e-01 : f32
    %18 = vector.broadcast %cst_9 : f32 to vector<16x128xf32>
    %19 = arith.mulf %18, %17 : vector<16x128xf32>
    %20 = arith.mulf %7, %19 : vector<16x128xf32>
    %21 = arith.truncf %20 : vector<16x128xf32> to vector<16x128xbf16>
    %c0_10 = arith.constant 0 : index
    %c0_11 = arith.constant 0 : index
    %22 = vector.load %arg4[%c0_10, %c0_11] : memref<128x32xbf16, #tpu.memory_space<vmem>>, vector<128x32xbf16>
    %cst_12 = arith.constant dense<0.000000e+00> : vector<16x32xf32>
    %23 = tpu.matmul %21, %22, %cst_12 {dimension_numbers = #tpu.dot_dimension_numbers<[1], [0], [0], [1], [0, 0, 1, 1], [], []>} : vector<16x128xbf16>, vector<128x32xbf16>, vector<16x32xf32> -> vector<16x32xf32>
    %24 = arith.addf %2, %23 : vector<16x32xf32>
    %c0_13 = arith.constant 0 : index
    %c0_14 = arith.constant 0 : index
    %25 = vector.load %arg5[%c0_13, %c0_14] : memref<1x32xf32, #tpu.memory_space<vmem>>, vector<1x32xf32>
    %26 = vector.broadcast %25 : vector<1x32xf32> to vector<16x32xf32>
    %27 = arith.addf %24, %26 : vector<16x32xf32>
    %c0_15 = arith.constant 0 : index
    %c0_16 = arith.constant 0 : index
    %28 = vector.load %arg6[%c0_15, %c0_16] : memref<16x32xf32, #tpu.memory_space<vmem>>, vector<16x32xf32>
    tpu.vector_store %arg6[%c0_15, %c0_16], %27 {strides = array<i32>} : memref<16x32xf32, #tpu.memory_space<vmem>>, vector<16x32xf32>,
    return
  }
  func.func @transform_0(%arg0: i32) -> (i32, i32) {
    %c0_i32 = arith.constant 0 : i32
    %c0_i32_0 = arith.constant 0 : i32
    return %arg0, %c0_i32 : i32, i32
  }
  func.func @transform_1(%arg0: i32) -> (i32, i32) {
    %c0_i32 = arith.constant 0 : i32
    %c0_i32_0 = arith.constant 0 : i32
    %c0_i32_1 = arith.constant 0 : i32
    return %c0_i32, %c0_i32_0 : i32, i32
  }
  func.func @transform_2(%arg0: i32) -> (i32, i32) {
    %c0_i32 = arith.constant 0 : i32
    %c0_i32_0 = arith.constant 0 : i32
    %c0_i32_1 = arith.constant 0 : i32
    return %c0_i32, %c0_i32_0 : i32, i32
  }
  func.func @transform_3(%arg0: i32) -> (i32, i32) {
    %c0_i32 = arith.constant 0 : i32
    %c0_i32_0 = arith.constant 0 : i32
    %c0_i32_1 = arith.constant 0 : i32
    return %c0_i32, %c0_i32_0 : i32, i32
  }
  func.func @transform_4(%arg0: i32) -> (i32, i32) {
    %c0_i32 = arith.constant 0 : i32
    %c0_i32_0 = arith.constant 0 : i32
    %c0_i32_1 = arith.constant 0 : i32
    return %c0_i32, %c0_i32_0 : i32, i32
  }
  func.func @transform_5(%arg0: i32) -> (i32, i32) {
    %c0_i32 = arith.constant 0 : i32
    %c0_i32_0 = arith.constant 0 : i32
    return %arg0, %c0_i32 : i32, i32
  }
}

</mosaic_0001>

<llo_original>
// kernel: tpu_custom_call.1
$region0: #{tpu_custom_call.1}
  #allocation0 [shape = 'u32[]', space=smem, size = 0x4, offset = 0x4, fixed_abs, tag = 'smem constant byte address 0x4 - core index']
  #allocation1 [shape = 'u32[144,128]{1,0:T(1,128)}', space=vmem, size = 0x12000, scoped, tag = 'internal scratch']
  %s0 = inlined_call_operand.vmem [shape: f32[16,32], index: 0, kind: input, shape index: {}]
  %s1 = inlined_call_operand.vmem [shape: bf16[32,128], index: 1, kind: input, shape index: {}]
  %s2 = inlined_call_operand.vmem [shape: f32[1,128], index: 2, kind: input, shape index: {}]
  %s3 = inlined_call_operand.vmem [shape: bf16[128,32], index: 3, kind: input, shape index: {}]
  %s4 = inlined_call_operand.vmem [shape: f32[1,32], index: 4, kind: input, shape index: {}]
  %s5 = inlined_call_operand.hbm [shape: f32[16,32], index: 5, kind: output, shape index: {}]
  %s6 = sld [smem:[#allocation0]]
  $region30: #{tpu_custom_call.1} parent=0
    _
  %s8 = ssub.s32 1, %s6
  %s9 = scalar_select 0, %s8, %s6
  $region1: #{tpu_custom_call.1} parent=0
    #allocation2 [shape = 'u8[8192]{0}', space=vmem, size = 0x2000, scoped, tag = 'output window, operand 0, single buffered']
    #allocation3 [shape = 's32[1]{0}', space=sflag, size = 0x4, scoped, tag = 'scoped memory for tpu_custom_call.1']
    %10 = vsyncpa [#allocation3], 0
    // Predicated region
    $region2: #{tpu_custom_call.1} parent=1 // pred_check
      _
    $region3: #{tpu_custom_call.1} parent=1 // pred_check_branch
      %12 = sbr.rel (0) target = $region5
    $region4: #{tpu_custom_call.1} parent=1 // pred_region
      _
    $region5: #{tpu_custom_call.1} parent=1 // pred_fallthru
      _
    // Predicated region
    $region6: #{tpu_custom_call.1} parent=1 // pred_check
      _
    $region7: #{tpu_custom_call.1} parent=1 // pred_check_branch
      %14 = sbr.rel (0) target = $region9
    $region8: #{tpu_custom_call.1} parent=1 // pred_region
      _
    $region9: #{tpu_custom_call.1} parent=1 // pred_fallthru
      _
    // Predicated region
    $region10: #{tpu_custom_call.1} parent=1 // pred_check
      _
    $region11: #{tpu_custom_call.1} parent=1 // pred_check_branch
      %16 = sbr.rel (0) target = $region13
    $region12: #{tpu_custom_call.1} parent=1 // pred_region
      _
    $region13: #{tpu_custom_call.1} parent=1 // pred_fallthru
      _
    // Predicated region
    $region14: #{tpu_custom_call.1} parent=1 // pred_check
      _
    $region15: #{tpu_custom_call.1} parent=1 // pred_check_branch
      %18 = sbr.rel (0) target = $region17
    $region16: #{tpu_custom_call.1} parent=1 // pred_region
      _
    $region17: #{tpu_custom_call.1} parent=1 // pred_fallthru
      _
    // Predicated region
    $region18: #{tpu_custom_call.1} parent=1 // pred_check
      _
    $region19: #{tpu_custom_call.1} parent=1 // pred_check_branch
      %20 = sbr.rel (0) target = $region21
    $region20: #{tpu_custom_call.1} parent=1 // pred_region
      _
    $region21: #{tpu_custom_call.1} parent=1 // pred_fallthru
      _
    %v22 = vld [vmem:[%s0] sm:$0xff]
    %v23 = vld [vmem:[%s0 + $0x8] sm:$0xff]
    %v24 = vpack.c.bf16 %v23, %v22
    %v25 = vld [vmem:[%s1] sm:$0xf]
    %v26 = vld [vmem:[%s1 + $0x4] sm:$0xf]
    %v27 = vld [vmem:[%s1 + $0x8] sm:$0xf]
    %v28 = vld [vmem:[%s1 + $0xc] sm:$0xf]
    %v29 = vld [vmem:[%s2] sm:$0x1]
    %v31 = vlaneseq
    %v32 = vshrl.u32 %v31, 7
    %v33 = vsub.s32 0, %v32
    %v34 = vrot.slane %v29, %v33
    %v40 = vunpack.c.l.b16 %v25
    %v41 = vunpack.c.l.b16 %v26
    %v42 = vunpack.c.l.b16 %v27
    %v43 = vunpack.c.l.b16 %v28
    %v44 = vpack.c.b16 %v41, %v40
    %v45 = vpack.c.b16 %v43, %v42
    %vm48 = vcmask 261120
    %v50 = vsel %vm48, %v24, 0
    %52 = vmatprep.subr.bf16.mxu0 0
    %53 = vmatpush1.bf16.msra.mxu0 %v44
    %54 = vmatprep.subr.bf16.mxu0 0
    %55 = vmatpush1.bf16.msra.mxu0 %v45
    %56 = vmatprep.subr.bf16.mxu0 0
    %57 = vmatpush1.bf16.msra.mxu0 0
    %58 = vmatprep.subr.bf16.mxu0 0
    %59 = vmatpush1.bf16.msra.mxu0 0
    %60 = vmatprep.subr.bf16.mxu0 0
    %61 = vmatpush1.bf16.msra.mxu0 0
    %62 = vmatprep.subr.bf16.mxu0 0
    %63 = vmatpush1.bf16.msra.mxu0 0
    %64 = vmatprep.subr.bf16.mxu0 0
    %65 = vmatpush1.bf16.msra.mxu0 0
    %66 = vmatprep.subr.bf16.mxu0 0
    %67 = vmatpush1.bf16.msra.mxu0 0
    %68 = vmatprep.subr.bf16.mxu0 0
    %69 = vmatpush1.bf16.msra.mxu0 0
    %70 = vmatprep.subr.bf16.mxu0 0
    %71 = vmatpush1.bf16.msra.mxu0 0
    %72 = vmatprep.subr.bf16.mxu0 0
    %73 = vmatpush1.bf16.msra.mxu0 0
    %74 = vmatprep.subr.bf16.mxu0 0
    %75 = vmatpush1.bf16.msra.mxu0 0
    %76 = vmatprep.subr.bf16.mxu0 0
    %77 = vmatpush1.bf16.msra.mxu0 0
    %78 = vmatprep.subr.bf16.mxu0 0
    %79 = vmatpush1.bf16.msra.mxu0 0
    %80 = vmatprep.subr.bf16.mxu0 0
    %81 = vmatpush1.bf16.msra.mxu0 0
    %82 = vmatprep.subr.bf16.mxu0 0
    %83 = vmatpush1.bf16.msra.mxu0 0
    %84 = vmatprep.mubr.bf16.mxu0 0
    %85 = vmatmul.mubr.bf16.gmra.mrb[0].mxu0 %v50
    %v86 = vpop.f32.mrb[0].mxu0
    %v87 = vadd.f32 %v34, %v86
    %v88 = vpop.f32.mrb[0].mxu0
    %v89 = vpop.f32.mrb[0].mxu0
    %v90 = vadd.f32 %v34, %v89
    %v91 = vpop.f32.mrb[0].mxu0
    %92 = vdwg.mxu0
    %v93 = vmul.f32 %v87, %v87
    %v94 = vmul.f32 %v90, %v90
    %v95 = vmul.f32 %v87, %v93
    %v96 = vmul.f32 %v90, %v94
    %v97 = vmul.f32 %v95, 0.044715
    %v98 = vmul.f32 %v96, 0.044715
    %v99 = vadd.f32 %v87, %v97
    %v100 = vadd.f32 %v90, %v98
    %v101 = vmul.f32 %v99, 0.7978846
    %v102 = vmul.f32 %v100, 0.7978846
    %v103 = vtanh.pop %v101
    %v104 = vtanh.pop %v102
    %v105 = vadd.f32 %v103, 1.0
    %v106 = vadd.f32 %v104, 1.0
    %v107 = vmul.f32 %v105, 0.5
    %v108 = vmul.f32 %v106, 0.5
    %v109 = vmul.f32 %v87, %v107
    %v110 = vmul.f32 %v90, %v108
    %v111 = vpack.c.bf16 %v110, %v109
    %v112 = vld [vmem:[%s3] sm:$0xf]
    %v113 = vld [vmem:[%s3 + $0x4] sm:$0xf]
    %v114 = vld [vmem:[%s3 + $0x8] sm:$0xf]
    %v115 = vld [vmem:[%s3 + $0xc] sm:$0xf]
    %v116 = vld [vmem:[%s3 + $0x10] sm:$0xf]
    %v117 = vld [vmem:[%s3 + $0x14] sm:$0xf]
    %v118 = vld [vmem:[%s3 + $0x18] sm:$0xf]
    %v119 = vld [vmem:[%s3 + $0x1c] sm:$0xf]
    %v120 = vld [vmem:[%s3 + $0x20] sm:$0xf]
    %v121 = vld [vmem:[%s3 + $0x24] sm:$0xf]
    %v122 = vld [vmem:[%s3 + $0x28] sm:$0xf]
    %v123 = vld [vmem:[%s3 + $0x2c] sm:$0xf]
    %v124 = vld [vmem:[%s3 + $0x30] sm:$0xf]
    %v125 = vld [vmem:[%s3 + $0x34] sm:$0xf]
    %v126 = vld [vmem:[%s3 + $0x38] sm:$0xf]
    %v127 = vld [vmem:[%s3 + $0x3c] sm:$0xf]
    %v128 = vld [vmem:[%s4] sm:$0x1]
    %v130 = vlaneseq
    %v131 = vshrl.u32 %v130, 7
    %v132 = vsub.s32 0, %v131
    %v133 = vrot.slane %v128, %v132
    %v151 = vunpack.c.l.b16 %v112
    %v152 = vunpack.c.l.b16 %v113
    %v153 = vunpack.c.l.b16 %v114
    %v154 = vunpack.c.l.b16 %v115
    %v155 = vunpack.c.l.b16 %v116
    %v156 = vunpack.c.l.b16 %v117
    %v157 = vunpack.c.l.b16 %v118
    %v158 = vunpack.c.l.b16 %v119
    %v159 = vunpack.c.l.b16 %v120
    %v160 = vunpack.c.l.b16 %v121
    %v161 = vunpack.c.l.b16 %v122
    %v162 = vunpack.c.l.b16 %v123
    %v163 = vunpack.c.l.b16 %v124
    %v164 = vunpack.c.l.b16 %v125
    %v165 = vunpack.c.l.b16 %v126
    %v166 = vunpack.c.l.b16 %v127
    %v167 = vpack.c.b16 %v152, %v151
    %v168 = vpack.c.b16 %v154, %v153
    %v169 = vpack.c.b16 %v156, %v155
    %v170 = vpack.c.b16 %v158, %v157
    %v171 = vpack.c.b16 %v160, %v159
    %v172 = vpack.c.b16 %v162, %v161
    %v173 = vpack.c.b16 %v164, %v163
    %v174 = vpack.c.b16 %v166, %v165
    %183 = vmatprep.subr.bf16.mxu0 0
    %184 = vmatpush1.bf16.msra.mxu0 %v167
    %185 = vmatprep.subr.bf16.mxu0 0
    %186 = vmatpush1.bf16.msra.mxu0 %v168
    %187 = vmatprep.subr.bf16.mxu0 0
    %188 = vmatpush1.bf16.msra.mxu0 %v169
    %189 = vmatprep.subr.bf16.mxu0 0
    %190 = vmatpush1.bf16.msra.mxu0 %v170
    %191 = vmatprep.subr.bf16.mxu0 0
    %192 = vmatpush1.bf16.msra.mxu0 %v171
    %193 = vmatprep.subr.bf16.mxu0 0
    %194 = vmatpush1.bf16.msra.mxu0 %v172
    %195 = vmatprep.subr.bf16.mxu0 0
    %196 = vmatpush1.bf16.msra.mxu0 %v173
    %197 = vmatprep.subr.bf16.mxu0 0
    %198 = vmatpush1.bf16.msra.mxu0 %v174
    %199 = vmatprep.subr.bf16.mxu0 0
    %200 = vmatpush1.bf16.msra.mxu0 0
    %201 = vmatprep.subr.bf16.mxu0 0
    %202 = vmatpush1.bf16.msra.mxu0 0
    %203 = vmatprep.subr.bf16.mxu0 0
    %204 = vmatpush1.bf16.msra.mxu0 0
    %205 = vmatprep.subr.bf16.mxu0 0
    %206 = vmatpush1.bf16.msra.mxu0 0
    %207 = vmatprep.subr.bf16.mxu0 0
    %208 = vmatpush1.bf16.msra.mxu0 0
    %209 = vmatprep.subr.bf16.mxu0 0
    %210 = vmatpush1.bf16.msra.mxu0 0
    %211 = vmatprep.subr.bf16.mxu0 0
    %212 = vmatpush1.bf16.msra.mxu0 0
    %213 = vmatprep.subr.bf16.mxu0 0
    %214 = vmatpush1.bf16.msra.mxu0 0
    %215 = vmatprep.mubr.bf16.mxu0 0
    %216 = vmatmul.mubr.bf16.gmra.mrb[0].mxu0 %v111
    %v217 = vpop.f32.mrb[0].mxu0
    %v218 = vadd.f32 %v133, %v217
    %v219 = vpop.f32.mrb[0].mxu0
    %v220 = vpop.f32.mrb[0].mxu0
    %v221 = vadd.f32 %v133, %v220
    %v222 = vpop.f32.mrb[0].mxu0
    %223 = vdwg.mxu0
    %224 = vst.msk [vmem:[#allocation2] sm:$0xff] %vm48, %v218
    %225 = vst.msk [vmem:[#allocation2 + $0x8] sm:$0xff] %vm48, %v221
    // Predicated region
    $region22: #{tpu_custom_call.1} parent=1 // pred_check
      _
    $region23: #{tpu_custom_call.1} parent=1 // pred_check_branch
      %227 = sbr.rel (0) target = $region25
    $region24: #{tpu_custom_call.1} parent=1 // pred_region
      %s229 = ssub.s32 256, 256
      %230 = vsyncadd [#allocation3], %s229
      %s231 = sshll.u32 [#allocation2], 4
      %s232 = int_to_ptr.vmem [resolvable:$true] %s231
      %237 = dma.vmem_to_hbm [thread:$0]  %s232, 256, %s5, [#allocation3], 128, 128, 8
    $region25: #{tpu_custom_call.1} parent=1 // pred_fallthru
      _
    // Predicated region
    $region26: #{tpu_custom_call.1} parent=1 // pred_check
      _
    $region27: #{tpu_custom_call.1} parent=1 // pred_check_branch
      %239 = sbr.rel (0) target = $region29
    $region28: #{tpu_custom_call.1} parent=1 // pred_region
      %240 = dma.done [#allocation3], 256
    $region29: #{tpu_custom_call.1} parent=1 // pred_fallthru
      _
    %241 = vsyncpa [#allocation3], 1

</llo_original>
